<compile_context>
chip_gen: v6e
topology: v6e:2x2x1
jax: 0.10.0
libtpu: 0.0.40
codegen_flags: <defaults>
</compile_context>

<pallas_src>
import jax
import jax.numpy as jnp
from jax.experimental import pallas as pl
from jax.experimental.pallas import tpu as pltpu

NUM = 2  # number of weighted losses (module hardcodes 2)


def _awl_kernel(p_ref, l0_ref, l1_ref, out_ref):
    # p_ref  : (2,)   f32 SMEM -> [p0, p1]
    # l0_ref : (1,)   f32 SMEM -> loss0
    # l1_ref : (1,)   f32 SMEM -> loss1
    # out_ref: (1, 1) f32 VMEM -> scalar result
    p0 = p_ref[0]
    p1 = p_ref[1]
    l0 = l0_ref[0]
    l1 = l1_ref[0]

    # Splat each SMEM scalar onto a single-element vreg; all subsequent math is
    # elementwise on (1,1) values (VPU mul/add, EUP log/reciprocal).  No iota,
    # no selects, no cross-lane reduction.
    p0v = jnp.full((1, 1), p0, jnp.float32)
    p1v = jnp.full((1, 1), p1, jnp.float32)
    l0v = jnp.full((1, 1), l0, jnp.float32)
    l1v = jnp.full((1, 1), l1, jnp.float32)

    p0sq = p0v * p0v
    p1sq = p1v * p1v

    term0 = 0.5 * l0v * pl.reciprocal(p0sq, approx=False) + jnp.log(1.0 + p0sq)
    term1 = 0.5 * l1v * pl.reciprocal(p1sq, approx=False) + jnp.log(1.0 + p1sq)
    reg = (p0v * pl.reciprocal(p1v, approx=False) - 2.0) ** 2

    out_ref[...] = term0 + term1 + reg


def automatic_weighted_two_loss(params, loss0, loss1):
    """params: (2,) f32; loss0/loss1: scalar f32 losses. Returns scalar f32."""
    params = jnp.asarray(params, jnp.float32).reshape(NUM)
    l0 = jnp.asarray(loss0, jnp.float32).reshape(1)
    l1 = jnp.asarray(loss1, jnp.float32).reshape(1)

    out = pl.pallas_call(
        _awl_kernel,
        out_shape=jax.ShapeDtypeStruct((1, 1), jnp.float32),
        in_specs=[
            pl.BlockSpec(memory_space=pltpu.MemorySpace.SMEM),
            pl.BlockSpec(memory_space=pltpu.MemorySpace.SMEM),
            pl.BlockSpec(memory_space=pltpu.MemorySpace.SMEM),
        ],
        out_specs=pl.BlockSpec(memory_space=pltpu.MemorySpace.VMEM),
    )(params, l0, l1)
    return out[0, 0]


def _reference(params, loss0, loss1):
    p = jnp.asarray(params, jnp.float32)
    losses = jnp.stack([jnp.asarray(loss0, jnp.float32),
                        jnp.asarray(loss1, jnp.float32)])
    s = jnp.sum(0.5 / p**2 * losses + jnp.log(1.0 + p**2))
    return s + (p[0] / p[1] - 2.0) ** 2


if __name__ == "__main__":
    # deterministic parameter init per module __init__
    params = jnp.array([0.5, 0.5], jnp.float32)

    # deterministic synthetic scalar losses (positive, like real training losses)
    key = jax.random.PRNGKey(0)
    k0, k1 = jax.random.split(key)
    loss0 = jnp.abs(jax.random.normal(k0, (), jnp.float32)) + 0.1
    loss1 = jnp.abs(jax.random.normal(k1, (), jnp.float32)) + 0.1

    out = automatic_weighted_two_loss(params, loss0, loss1)
    out = jax.block_until_ready(out)

    ref = _reference(params, loss0, loss1)
    assert jnp.allclose(out, ref, rtol=1e-5, atol=1e-5), (out, ref)

    print("KERNEL_OK")
</pallas_src>

<mosaic_0001>
module attributes {stable_mosaic.version = 11 : i64} {
  func.func @_awl_kernel(%arg0: memref<2xf32, #tpu.memory_space<smem>>, %arg1: memref<1xf32, #tpu.memory_space<smem>>, %arg2: memref<1xf32, #tpu.memory_space<smem>>, %arg3: memref<1x1xf32, #tpu.memory_space<vmem>>) attributes {dimension_semantics = [], scalar_prefetch = 0 : i64, scratch_operands = 0 : i64, tpu.core_type = #tpu.core_type<tc>} {
    %c0 = arith.constant 0 : index
    %0 = memref.load %arg0[%c0] : memref<2xf32, #tpu.memory_space<smem>>
    %c1 = arith.constant 1 : index
    %1 = memref.load %arg0[%c1] : memref<2xf32, #tpu.memory_space<smem>>
    %c0_0 = arith.constant 0 : index
    %2 = memref.load %arg1[%c0_0] : memref<1xf32, #tpu.memory_space<smem>>
    %c0_1 = arith.constant 0 : index
    %3 = memref.load %arg2[%c0_1] : memref<1xf32, #tpu.memory_space<smem>>
    %4 = vector.broadcast %0 : f32 to vector<1x1xf32>
    %5 = vector.broadcast %1 : f32 to vector<1x1xf32>
    %6 = vector.broadcast %2 : f32 to vector<1x1xf32>
    %7 = vector.broadcast %3 : f32 to vector<1x1xf32>
    %8 = arith.mulf %4, %4 : vector<1x1xf32>
    %9 = arith.mulf %5, %5 : vector<1x1xf32>
    %cst = arith.constant 5.000000e-01 : f32
    %10 = vector.broadcast %cst : f32 to vector<1x1xf32>
    %11 = arith.mulf %10, %6 : vector<1x1xf32>
    %12 = tpu.reciprocal %8 : vector<1x1xf32> -> vector<1x1xf32>
    %13 = arith.mulf %11, %12 : vector<1x1xf32>
    %cst_2 = arith.constant 1.000000e+00 : f32
    %14 = vector.broadcast %cst_2 : f32 to vector<1x1xf32>
    %15 = arith.addf %14, %8 : vector<1x1xf32>
    %16 = math.log %15 : vector<1x1xf32>
    %17 = arith.addf %13, %16 : vector<1x1xf32>
    %cst_3 = arith.constant 5.000000e-01 : f32
    %18 = vector.broadcast %cst_3 : f32 to vector<1x1xf32>
    %19 = arith.mulf %18, %7 : vector<1x1xf32>
    %20 = tpu.reciprocal %9 : vector<1x1xf32> -> vector<1x1xf32>
    %21 = arith.mulf %19, %20 : vector<1x1xf32>
    %cst_4 = arith.constant 1.000000e+00 : f32
    %22 = vector.broadcast %cst_4 : f32 to vector<1x1xf32>
    %23 = arith.addf %22, %9 : vector<1x1xf32>
    %24 = math.log %23 : vector<1x1xf32>
    %25 = arith.addf %21, %24 : vector<1x1xf32>
    %26 = tpu.reciprocal %5 : vector<1x1xf32> -> vector<1x1xf32>
    %27 = arith.mulf %4, %26 : vector<1x1xf32>
    %cst_5 = arith.constant 2.000000e+00 : f32
    %28 = vector.broadcast %cst_5 : f32 to vector<1x1xf32>
    %29 = arith.subf %27, %28 : vector<1x1xf32>
    %30 = arith.mulf %29, %29 : vector<1x1xf32>
    %31 = arith.addf %17, %25 : vector<1x1xf32>
    %32 = arith.addf %31, %30 : vector<1x1xf32>
    %c0_6 = arith.constant 0 : index
    %c0_7 = arith.constant 0 : index
    %33 = vector.load %arg3[%c0_6, %c0_7] : memref<1x1xf32, #tpu.memory_space<vmem>>, vector<1x1xf32>
    tpu.vector_store %arg3[%c0_6, %c0_7], %32 {strides = array<i32>} : memref<1x1xf32, #tpu.memory_space<vmem>>, vector<1x1xf32>,
    return
  }
}

</mosaic_0001>

<llo_original>
// kernel: tpu_custom_call.1
$region0: #{tpu_custom_call.1}
  #allocation0 [shape = 'u32[]', space=smem, size = 0x4, offset = 0x4, fixed_abs, tag = 'smem constant byte address 0x4 - core index']
  #allocation1 [shape = 'u32[144,128]{1,0:T(1,128)}', space=vmem, size = 0x12000, scoped, tag = 'internal scratch']
  #allocation2 [shape = 'f32[1]{0:T(128)S(6)}', space=smem, size = 0x200, scoped, tag = 'scoped memory for tpu_custom_call.1']
  #allocation3 [shape = 'f32[1]{0:T(128)S(6)}', space=smem, size = 0x200, scoped, tag = 'scoped memory for tpu_custom_call.1']
  %s0 = inlined_call_operand.vmem [shape: f32[2], index: 0, kind: input, shape index: {}]
  %s1 = inlined_call_operand.<no memory space> [shape: f32[1], index: 1, kind: input, shape index: {}]
  %s2 = inlined_call_operand.<no memory space> [shape: f32[1], index: 2, kind: input, shape index: {}]
  %s3 = inlined_call_operand.hbm [shape: f32[1,1], index: 3, kind: output, shape index: {}]
  %s4 = sld [smem:[#allocation0]]
  $region26: #{tpu_custom_call.1} parent=0
    _
  %s6 = ssub.s32 1, %s4
  %s7 = scalar_select 0, %s6, %s4
  %8 = sst [smem:[#allocation2]] %s1
  %9 = sst [smem:[#allocation3]] %s2
  $region1: #{tpu_custom_call.1} parent=0
    #allocation4 [shape = 'u8[512]{0}', space=smem, size = 0x200, scoped, tag = 'input window, operand 0, single buffered']
    #allocation5 [shape = 's32[1]{0}', space=sflag, size = 0x4, scoped, tag = 'scoped memory for tpu_custom_call.1']
    #allocation6 [shape = 's32[1]{0}', space=sflag, size = 0x4, scoped, tag = 'scoped memory for tpu_custom_call.1']
    #allocation7 [shape = 'u8[512]{0}', space=vmem, size = 0x400, scoped, tag = 'output window, operand 0, single buffered']
    %10 = vsyncpa [#allocation6], 0
    %11 = vsyncpa [#allocation5], 0
    // Predicated region
    $region2: #{tpu_custom_call.1} parent=1 // pred_check
      _
    $region3: #{tpu_custom_call.1} parent=1 // pred_check_branch
      %13 = sbr.rel (0) target = $region5
    $region4: #{tpu_custom_call.1} parent=1 // pred_region
      %s15 = ssub.s32 16, 16
      %16 = vsyncadd [#allocation6], %s15
      %s18 = sshll.u32 %s0, 4
      %s19 = int_to_ptr.vmem [resolvable:$true] %s18
      %21 = dma.vmem_to_smem %s19, 16, [#allocation4], [#allocation6]
    $region5: #{tpu_custom_call.1} parent=1 // pred_fallthru
      _
    // Predicated region
    $region6: #{tpu_custom_call.1} parent=1 // pred_check
      _
    $region7: #{tpu_custom_call.1} parent=1 // pred_check_branch
      %23 = sbr.rel (0) target = $region9
    $region8: #{tpu_custom_call.1} parent=1 // pred_region
      _
    $region9: #{tpu_custom_call.1} parent=1 // pred_fallthru
      _
    // Predicated region
    $region10: #{tpu_custom_call.1} parent=1 // pred_check
      _
    $region11: #{tpu_custom_call.1} parent=1 // pred_check_branch
      %25 = sbr.rel (0) target = $region13
    $region12: #{tpu_custom_call.1} parent=1 // pred_region
      _
    $region13: #{tpu_custom_call.1} parent=1 // pred_fallthru
      _
    // Predicated region
    $region14: #{tpu_custom_call.1} parent=1 // pred_check
      _
    $region15: #{tpu_custom_call.1} parent=1 // pred_check_branch
      %27 = sbr.rel (0) target = $region17
    $region16: #{tpu_custom_call.1} parent=1 // pred_region
      %28 = dma.done [#allocation6], 16
    $region17: #{tpu_custom_call.1} parent=1 // pred_fallthru
      _
    %29 = sfence
    %s30 = sld [smem:[#allocation4]]
    %s31 = sld [smem:[#allocation4 + $0x1]]
    %s32 = sld [smem:[#allocation2]]
    %s33 = sld [smem:[#allocation3]]
    %v34 = vstv %s30
    %v35 = vstv %s31
    %v36 = vstv %s32
    %v37 = vstv %s33
    %v38 = vmul.f32 %v34, %v34
    %v39 = vmul.f32 %v35, %v35
    %v40 = vmul.f32 %v36, 0.5
    %v41 = vrcp.pop %v38
    %v42 = vmul.f32 %v40, %v41
    %v43 = vadd.f32 %v38, 1.0
    %v44 = vlog2.pop %v43
    %v45 = vmul.f32 %v44, 0.6931472
    %v46 = vadd.f32 %v42, %v45
    %v47 = vmul.f32 %v37, 0.5
    %v48 = vrcp.pop %v39
    %v49 = vmul.f32 %v47, %v48
    %v50 = vadd.f32 %v39, 1.0
    %v51 = vlog2.pop %v50
    %v52 = vmul.f32 %v51, 0.6931472
    %v53 = vadd.f32 %v49, %v52
    %v54 = vrcp.pop %v35
    %v55 = vmul.f32 %v34, %v54
    %v56 = vsub.f32 %v55, 2.0
    %v57 = vmul.f32 %v56, %v56
    %v58 = vadd.f32 %v46, %v53
    %v59 = vadd.f32 %v58, %v57
    %vm60 = vcmask 0
    %61 = vst.msk [vmem:[#allocation7] sm:$0x1] %vm60, %v59
    // Predicated region
    $region18: #{tpu_custom_call.1} parent=1 // pred_check
      _
    $region19: #{tpu_custom_call.1} parent=1 // pred_check_branch
      %63 = sbr.rel (0) target = $region21
    $region20: #{tpu_custom_call.1} parent=1 // pred_region
      %s65 = ssub.s32 16, 16
      %66 = vsyncadd [#allocation5], %s65
      %s68 = sshll.u32 [#allocation7], 4
      %s69 = int_to_ptr.vmem [resolvable:$true] %s68
      %71 = dma.vmem_to_hbm [thread:$0]  %s69, 16, %s3, [#allocation5]
    $region21: #{tpu_custom_call.1} parent=1 // pred_fallthru
      _
    // Predicated region
    $region22: #{tpu_custom_call.1} parent=1 // pred_check
      _
    $region23: #{tpu_custom_call.1} parent=1 // pred_check_branch
      %73 = sbr.rel (0) target = $region25
    $region24: #{tpu_custom_call.1} parent=1 // pred_region
      %74 = dma.done [#allocation5], 16
    $region25: #{tpu_custom_call.1} parent=1 // pred_fallthru
      _
    %75 = vsyncpa [#allocation5], 1
    %76 = vsyncpa [#allocation6], 1

</llo_original>
